<compile_context>
chip_gen: v7x
topology: tpu7x:2x2x1
jax: 0.10.0
libtpu: 0.0.40
codegen_flags: <defaults>
</compile_context>

<pallas_src>
import jax
import jax.numpy as jnp
from jax.experimental import pallas as pl
from jax.experimental.pallas import tpu as pltpu

_C, _H, _W = 256, 15, 20
_FLAT = _C * _H * _W          # 76800 = 600 * 128  (lane-aligned)
_LANES = 128
_ROWS_PER_BATCH = _FLAT // _LANES   # 600 rows/batch, 600 % 8 == 0


def _mask_encode_kernel(x_ref, o_ref):
    # Identity copy of one (block_rows, 128) tile through VMEM.
    o_ref[...] = x_ref[...]


def _pick_block_rows(rows: int) -> int:
    """Rows per grid step: multiple of 8, ~8 batches (4800 rows, 2.4 MB fp32),
    capped at half the total rows so there are always >=2 grid steps for the
    v7x megacore to split across its two TensorCores."""
    half = max(8, (rows // 2) // 8 * 8)
    return max(8, min(4800, half, rows))


def mask_encode(mask: jax.Array) -> jax.Array:
    """Equivalent of Mask_Encode.forward: mask.view(B, 256, 15, 20)."""
    b = mask.shape[0]
    assert mask.size == b * _FLAT, (
        f"mask must contain {b}*{_FLAT} elements, got shape {mask.shape}"
    )

    # Glue: flatten to a lane-dense (rows, 128) layout (row-major ordering is
    # identical to torch .view on a contiguous NCHW tensor).
    rows = b * _ROWS_PER_BATCH
    x_flat = mask.reshape(rows, _LANES)

    block_rows = _pick_block_rows(rows)
    grid = (pl.cdiv(rows, block_rows),)

    out_flat = pl.pallas_call(
        _mask_encode_kernel,
        out_shape=jax.ShapeDtypeStruct((rows, _LANES), mask.dtype),
        grid_spec=pltpu.PrefetchScalarGridSpec(
            num_scalar_prefetch=0,
            grid=grid,
            in_specs=[pl.BlockSpec((block_rows, _LANES), lambda i: (i, 0))],
            out_specs=pl.BlockSpec((block_rows, _LANES), lambda i: (i, 0)),
        ),
        # Identity copy: output may reuse the input HBM allocation.
        input_output_aliases={0: 0},
        compiler_params=pltpu.CompilerParams(
            dimension_semantics=("parallel",)
        ),
    )(x_flat)

    # Glue: zero-cost logical reshape to the encoded layout.
    return out_flat.reshape(b, _C, _H, _W)


if __name__ == "__main__":
    key = jax.random.PRNGKey(0)
    batch = 2
    # NCHW mask whose per-batch element count matches 256*15*20 = 76800.
    mask = jax.random.uniform(key, (batch, 1, 240, 320), dtype=jnp.float32)

    # Pure-JAX reference of torch's .view (metadata-only reshape).
    ref = mask.reshape(batch, 256, 15, 20)

    out = mask_encode(mask)
    out = jax.block_until_ready(out)

    assert out.shape == (batch, 256, 15, 20)
    assert out.dtype == mask.dtype
    assert bool(jnp.array_equal(out, ref))

    print("KERNEL_OK")
</pallas_src>

<mosaic_0001>
module attributes {stable_mosaic.version = 11 : i64} {
  func.func @_mask_encode_kernel(%arg0: i32, %arg1: memref<600x128xf32, #tpu.memory_space<vmem>>, %arg2: memref<600x128xf32, #tpu.memory_space<vmem>>) attributes {dimension_semantics = [#tpu.dimension_semantics<parallel>], iteration_bounds = array<i64: 2>, scalar_prefetch = 0 : i64, scratch_operands = 0 : i64, tpu.core_type = #tpu.core_type<tc>, window_params = [{transform_indices = @transform_0, window_bounds = array<i64: 600, 128>}, {transform_indices = @transform_1, window_bounds = array<i64: 600, 128>}]} {
    %c0 = arith.constant 0 : index
    %c0_0 = arith.constant 0 : index
    %0 = vector.load %arg1[%c0, %c0_0] : memref<600x128xf32, #tpu.memory_space<vmem>>, vector<600x128xf32>
    %c0_1 = arith.constant 0 : index
    %c0_2 = arith.constant 0 : index
    %1 = vector.load %arg2[%c0_1, %c0_2] : memref<600x128xf32, #tpu.memory_space<vmem>>, vector<600x128xf32>
    tpu.vector_store %arg2[%c0_1, %c0_2], %0 {strides = array<i32>} : memref<600x128xf32, #tpu.memory_space<vmem>>, vector<600x128xf32>,
    return
  }
  func.func @transform_0(%arg0: i32) -> (i32, i32) {
    %c0_i32 = arith.constant 0 : i32
    %c0_i32_0 = arith.constant 0 : i32
    return %arg0, %c0_i32 : i32, i32
  }
  func.func @transform_1(%arg0: i32) -> (i32, i32) {
    %c0_i32 = arith.constant 0 : i32
    %c0_i32_0 = arith.constant 0 : i32
    return %arg0, %c0_i32 : i32, i32
  }
}

</mosaic_0001>

<llo_original>
// kernel: tpu_custom_call.1
$region0: #{tpu_custom_call.1}
  #allocation0 [shape = 'u32[]', space=smem, size = 0x4, offset = 0x4, fixed_abs, tag = 'smem constant byte address 0x4 - core index']
  #allocation1 [shape = 'u32[144,128]{1,0:T(1,128)}', space=vmem, size = 0x12000, scoped, tag = 'internal scratch']
  %s0 = inlined_call_operand.hbm [shape: f32[1200,128], index: 0, kind: input, shape index: {}, may-alias: {0,1}]
  %s1 = inlined_call_operand.hbm [shape: f32[1200,128], index: 1, kind: output, shape index: {}, may-alias: {0,1}]
  %s2 = sld [smem:[#allocation0]]
  $region41: #{tpu_custom_call.1} parent=0
    _
  %s4 = ssub.s32 1, %s2
  %s5 = scalar_select 0, %s4, %s2
  $region1: #{tpu_custom_call.1} parent=0
    #allocation2 [shape = 'u8[614400]{0}', space=vmem, size = 0x96000, scoped, tag = 'input window, operand 0']
    #allocation3 [shape = 's32[2]{0}', space=sflag, size = 0x8, scoped, tag = 'scoped memory for tpu_custom_call.1']
    #allocation4 [shape = 's32[2]{0}', space=sflag, size = 0x8, scoped, tag = 'scoped memory for tpu_custom_call.1']
    #allocation5 [shape = 'u8[614400]{0}', space=vmem, size = 0x96000, scoped, tag = 'output window, operand 0']
    %6 = vsyncpa [#allocation3], 0
    %s7 = scalar_lea.sflag [#allocation3], 1
    %8 = vsyncpa %s7, 0
    %9 = vsyncpa [#allocation4], 0
    %s10 = scalar_lea.sflag [#allocation4], 1
    %11 = vsyncpa %s10, 0
    loop: start=0, step=1, limit=4
    $region2: #{tpu_custom_call.1} parent=1 // loop_pre_header
      _
    $region3: #{tpu_custom_call.1} parent=1 // loop_header
      %s13 = sphi 0, %s17
      %p14 = scmp.ge.s32.totalorder %s13, 4
      %s23 = sphi 0, %s25
      %s26 = sphi 0, %s23
      %s27 = sphi 0, %s26
      %s43 = sphi 0, %s27
      %s49 = sphi 0, %s51
      %s52 = sphi 0, %s49
      %s53 = sphi 0, %s52
      %s69 = sphi 0, %s53
    $region4: #{tpu_custom_call.1} parent=1 // loop_header_branch
      %16 = sbr.rel (%p14) target = $region8
    $region5: #{tpu_custom_call.1} parent=1 // loop_body
      %s18 = ssub.s32 %s13, 1
      %s19 = ssub.s32 %s13, 2
      %s20 = sadd.s32 %s13, 1
      %s21 = ssub.s32 %s13, %s20
      %p22 = scmp.eq.s32.totalorder %s21, 0
      %s24 = sadd.s32 %s23, 1
      %s25 = scalar_select %p22, %s23, %s24
      %p28 = pneg %p22
      %p29 = scmp.eq.s32.totalorder %s13, 1
      %p30 = por %p28, %p29
      %p31 = scmp.ne.s32.totalorder %s23, %s26
      %p32 = scmp.eq.s32.totalorder %s13, 0
      %p33 = por %p31, %p32
      %p34 = scmp.ne.s32.totalorder %s23, %s26
      %p35 = scmp.eq.s32.totalorder %s18, 1
      %p36 = por %p34, %p35
      %p37 = scmp.ne.s32.totalorder %s26, %s27
      %p38 = scmp.eq.s32.totalorder %s18, 0
      %p39 = por %p37, %p38
      %p40 = scmp.ne.s32.totalorder %s26, %s27
      %p41 = scmp.eq.s32.totalorder %s19, 1
      %p42 = por %p40, %p41
      %p44 = scmp.ne.s32.totalorder %s27, %s43
      %p45 = scmp.eq.s32.totalorder %s19, 0
      %p46 = por %p44, %p45
      %s47 = ssub.s32 %s13, %s20
      %p48 = scmp.eq.s32.totalorder %s47, 0
      %s50 = sadd.s32 %s49, 1
      %s51 = scalar_select %p48, %s49, %s50
      %p54 = pneg %p48
      %p55 = scmp.eq.s32.totalorder %s13, 1
      %p56 = por %p54, %p55
      %p57 = scmp.ne.s32.totalorder %s49, %s52
      %p58 = scmp.eq.s32.totalorder %s13, 0
      %p59 = por %p57, %p58
      %p60 = scmp.ne.s32.totalorder %s49, %s52
      %p61 = scmp.eq.s32.totalorder %s18, 1
      %p62 = por %p60, %p61
      %p63 = scmp.ne.s32.totalorder %s52, %s53
      %p64 = scmp.eq.s32.totalorder %s18, 0
      %p65 = por %p63, %p64
      %p66 = scmp.ne.s32.totalorder %s52, %s53
      %p67 = scmp.eq.s32.totalorder %s19, 1
      %p68 = por %p66, %p67
      %p70 = scmp.ne.s32.totalorder %s53, %s69
      %p71 = scmp.eq.s32.totalorder %s19, 0
      %p72 = por %p70, %p71
      %p73 = scmp.le.s32.totalorder 1, %s13
      %p74 = scmp.lt.s32.totalorder %s13, 3
      %p75 = pnand %p73, %p74
      %p76 = pneg %p75
      // Predicated region
      $region9: #{tpu_custom_call.1} parent=5 // pred_check
        _
      $region10: #{tpu_custom_call.1} parent=5 // pred_check_branch
        %78 = sbr.rel (%p75) target = $region12
      $region11: #{tpu_custom_call.1} parent=5 // pred_region
        %s79 = ssub.s32 %s13, 1
      $region12: #{tpu_custom_call.1} parent=5 // pred_fallthru
        _
      %p80 = scmp.lt.s32.totalorder %s13, 2
      // Predicated region
      $region13: #{tpu_custom_call.1} parent=5 // pred_check
        %p81 = pneg %p80
      $region14: #{tpu_custom_call.1} parent=5 // pred_check_branch
        %83 = sbr.rel (%p81) target = $region16
      $region15: #{tpu_custom_call.1} parent=5 // pred_region
        // Predicated region
        $region17: #{tpu_custom_call.1} parent=15 // pred_check
          %p84 = pneg %p33
        $region18: #{tpu_custom_call.1} parent=15 // pred_check_branch
          %86 = sbr.rel (%p84) target = $region20
        $region19: #{tpu_custom_call.1} parent=15 // pred_region
          %s87 = sand.u32 %s23, 1
          %s88 = scalar_lea.sflag [#allocation3], %s87
          %s89 = sand.u32 %s23, 1
          %s90 = smul.addr %s89, 600
          %s91 = scalar_lea.vmem [#allocation2], %s90
          %s92 = smul.u32 75, %s13
          %s94 = ssub.s32 9600, 9600
          %95 = vsyncadd %s88, %s94
          %s96 = smul.addr %s92, 128
          %s97 = scalar_lea.hbm %s0, %s96
          %s98 = sshll.u32 %s91, 4
          %s99 = int_to_ptr.vmem [resolvable:$true] %s98
          %104 = dma.hbm_to_vmem [thread:$0]  %s97, 9600, %s99, %s88, 128, 128, 8
        $region20: #{tpu_custom_call.1} parent=15 // pred_fallthru
          _
      $region16: #{tpu_custom_call.1} parent=5 // pred_fallthru
        _
      %p105 = scmp.le.s32.totalorder 1, %s13
      %p106 = scmp.lt.s32.totalorder %s13, 3
      %p107 = pnand %p105, %p106
      %p108 = pneg %p107
      // Predicated region
      $region21: #{tpu_custom_call.1} parent=5 // pred_check
        _
      $region22: #{tpu_custom_call.1} parent=5 // pred_check_branch
        %110 = sbr.rel (%p107) target = $region24
      $region23: #{tpu_custom_call.1} parent=5 // pred_region
        %s111 = ssub.s32 %s13, 1
        %s112 = sand.u32 %s26, 1
        %s113 = scalar_lea.sflag [#allocation3], %s112
        %s114 = sand.u32 %s26, 1
        %s115 = smul.addr %s114, 600
        %s116 = scalar_lea.vmem [#allocation2], %s115
        // Predicated region
        $region25: #{tpu_custom_call.1} parent=23 // pred_check
          %p117 = pneg %p39
        $region26: #{tpu_custom_call.1} parent=23 // pred_check_branch
          %119 = sbr.rel (%p117) target = $region28
        $region27: #{tpu_custom_call.1} parent=23 // pred_region
          %120 = dma.done %s113, 9600
        $region28: #{tpu_custom_call.1} parent=23 // pred_fallthru
          _
        %s121 = sand.u32 %s26, 1
        %s122 = scalar_lea.sflag [#allocation3], %s121
        %s123 = sand.u32 %s26, 1
        %s124 = smul.addr %s123, 600
        %s125 = scalar_lea.vmem [#allocation2], %s124
        %p126 = pneg %p39
        %p127 = pneg %p36
        %p128 = pneg %p65
        %p129 = pneg %p62
        %s130 = sand.u32 %s52, 1
        %s131 = scalar_lea.sflag [#allocation4], %s130
        %s132 = sand.u32 %s52, 1
        %s133 = smul.addr %s132, 600
        %s134 = scalar_lea.vmem [#allocation5], %s133
        %s135 = smul.u32 75, %s18
        %s136 = smul.u32 75, %s18
        %v137 = vld [vmem:[%s116] sm:$0xff]
        %v138 = vld [vmem:[%s116 + $0x8] sm:$0xff]
        %v139 = vld [vmem:[%s116 + $0x10] sm:$0xff]
        %v140 = vld [vmem:[%s116 + $0x18] sm:$0xff]
        %v141 = vld [vmem:[%s116 + $0x20] sm:$0xff]
        %v142 = vld [vmem:[%s116 + $0x28] sm:$0xff]
        %v143 = vld [vmem:[%s116 + $0x30] sm:$0xff]
        %v144 = vld [vmem:[%s116 + $0x38] sm:$0xff]
        %v145 = vld [vmem:[%s116 + $0x40] sm:$0xff]
        %v146 = vld [vmem:[%s116 + $0x48] sm:$0xff]
        %v147 = vld [vmem:[%s116 + $0x50] sm:$0xff]
        %v148 = vld [vmem:[%s116 + $0x58] sm:$0xff]
        %v149 = vld [vmem:[%s116 + $0x60] sm:$0xff]
        %v150 = vld [vmem:[%s116 + $0x68] sm:$0xff]
        %v151 = vld [vmem:[%s116 + $0x70] sm:$0xff]
        %v152 = vld [vmem:[%s116 + $0x78] sm:$0xff]
        %v153 = vld [vmem:[%s116 + $0x80] sm:$0xff]
        %v154 = vld [vmem:[%s116 + $0x88] sm:$0xff]
        %v155 = vld [vmem:[%s116 + $0x90] sm:$0xff]
        %v156 = vld [vmem:[%s116 + $0x98] sm:$0xff]
        %v157 = vld [vmem:[%s116 + $0xa0] sm:$0xff]
        %v158 = vld [vmem:[%s116 + $0xa8] sm:$0xff]
        %v159 = vld [vmem:[%s116 + $0xb0] sm:$0xff]
        %v160 = vld [vmem:[%s116 + $0xb8] sm:$0xff]
        %v161 = vld [vmem:[%s116 + $0xc0] sm:$0xff]
        %v162 = vld [vmem:[%s116 + $0xc8] sm:$0xff]
        %v163 = vld [vmem:[%s116 + $0xd0] sm:$0xff]
        %v164 = vld [vmem:[%s116 + $0xd8] sm:$0xff]
        %v165 = vld [vmem:[%s116 + $0xe0] sm:$0xff]
        %v166 = vld [vmem:[%s116 + $0xe8] sm:$0xff]
        %v167 = vld [vmem:[%s116 + $0xf0] sm:$0xff]
        %v168 = vld [vmem:[%s116 + $0xf8] sm:$0xff]
        %v169 = vld [vmem:[%s116 + $0x100] sm:$0xff]
        %v170 = vld [vmem:[%s116 + $0x108] sm:$0xff]
        %v171 = vld [vmem:[%s116 + $0x110] sm:$0xff]
        %v172 = vld [vmem:[%s116 + $0x118] sm:$0xff]
        %v173 = vld [vmem:[%s116 + $0x120] sm:$0xff]
        %v174 = vld [vmem:[%s116 + $0x128] sm:$0xff]
        %v175 = vld [vmem:[%s116 + $0x130] sm:$0xff]
        %v176 = vld [vmem:[%s116 + $0x138] sm:$0xff]
        %v177 = vld [vmem:[%s116 + $0x140] sm:$0xff]
        %v178 = vld [vmem:[%s116 + $0x148] sm:$0xff]
        %v179 = vld [vmem:[%s116 + $0x150] sm:$0xff]
        %v180 = vld [vmem:[%s116 + $0x158] sm:$0xff]
        %v181 = vld [vmem:[%s116 + $0x160] sm:$0xff]
        %v182 = vld [vmem:[%s116 + $0x168] sm:$0xff]
        %v183 = vld [vmem:[%s116 + $0x170] sm:$0xff]
        %v184 = vld [vmem:[%s116 + $0x178] sm:$0xff]
        %v185 = vld [vmem:[%s116 + $0x180] sm:$0xff]
        %v186 = vld [vmem:[%s116 + $0x188] sm:$0xff]
        %v187 = vld [vmem:[%s116 + $0x190] sm:$0xff]
        %v188 = vld [vmem:[%s116 + $0x198] sm:$0xff]
        %v189 = vld [vmem:[%s116 + $0x1a0] sm:$0xff]
        %v190 = vld [vmem:[%s116 + $0x1a8] sm:$0xff]
        %v191 = vld [vmem:[%s116 + $0x1b0] sm:$0xff]
        %v192 = vld [vmem:[%s116 + $0x1b8] sm:$0xff]
        %v193 = vld [vmem:[%s116 + $0x1c0] sm:$0xff]
        %v194 = vld [vmem:[%s116 + $0x1c8] sm:$0xff]
        %v195 = vld [vmem:[%s116 + $0x1d0] sm:$0xff]
        %v196 = vld [vmem:[%s116 + $0x1d8] sm:$0xff]
        %v197 = vld [vmem:[%s116 + $0x1e0] sm:$0xff]
        %v198 = vld [vmem:[%s116 + $0x1e8] sm:$0xff]
        %v199 = vld [vmem:[%s116 + $0x1f0] sm:$0xff]
        %v200 = vld [vmem:[%s116 + $0x1f8] sm:$0xff]
        %v201 = vld [vmem:[%s116 + $0x200] sm:$0xff]
        %v202 = vld [vmem:[%s116 + $0x208] sm:$0xff]
        %v203 = vld [vmem:[%s116 + $0x210] sm:$0xff]
        %v204 = vld [vmem:[%s116 + $0x218] sm:$0xff]
        %v205 = vld [vmem:[%s116 + $0x220] sm:$0xff]
        %v206 = vld [vmem:[%s116 + $0x228] sm:$0xff]
        %v207 = vld [vmem:[%s116 + $0x230] sm:$0xff]
        %v208 = vld [vmem:[%s116 + $0x238] sm:$0xff]
        %v209 = vld [vmem:[%s116 + $0x240] sm:$0xff]
        %v210 = vld [vmem:[%s116 + $0x248] sm:$0xff]
        %v211 = vld [vmem:[%s116 + $0x250] sm:$0xff]
        %212 = vst [vmem:[%s134] sm:$0xff] %v137
        %213 = vst [vmem:[%s134 + $0x8] sm:$0xff] %v138
        %214 = vst [vmem:[%s134 + $0x10] sm:$0xff] %v139
        %215 = vst [vmem:[%s134 + $0x18] sm:$0xff] %v140
        %216 = vst [vmem:[%s134 + $0x20] sm:$0xff] %v141
        %217 = vst [vmem:[%s134 + $0x28] sm:$0xff] %v142
        %218 = vst [vmem:[%s134 + $0x30] sm:$0xff] %v143
        %219 = vst [vmem:[%s134 + $0x38] sm:$0xff] %v144
        %220 = vst [vmem:[%s134 + $0x40] sm:$0xff] %v145
        %221 = vst [vmem:[%s134 + $0x48] sm:$0xff] %v146
        %222 = vst [vmem:[%s134 + $0x50] sm:$0xff] %v147
        %223 = vst [vmem:[%s134 + $0x58] sm:$0xff] %v148
        %224 = vst [vmem:[%s134 + $0x60] sm:$0xff] %v149
        %225 = vst [vmem:[%s134 + $0x68] sm:$0xff] %v150
        %226 = vst [vmem:[%s134 + $0x70] sm:$0xff] %v151
        %227 = vst [vmem:[%s134 + $0x78] sm:$0xff] %v152
        %228 = vst [vmem:[%s134 + $0x80] sm:$0xff] %v153
        %229 = vst [vmem:[%s134 + $0x88] sm:$0xff] %v154
        %230 = vst [vmem:[%s134 + $0x90] sm:$0xff] %v155
        %231 = vst [vmem:[%s134 + $0x98] sm:$0xff] %v156
        %232 = vst [vmem:[%s134 + $0xa0] sm:$0xff] %v157
        %233 = vst [vmem:[%s134 + $0xa8] sm:$0xff] %v158
        %234 = vst [vmem:[%s134 + $0xb0] sm:$0xff] %v159
        %235 = vst [vmem:[%s134 + $0xb8] sm:$0xff] %v160
        %236 = vst [vmem:[%s134 + $0xc0] sm:$0xff] %v161
        %237 = vst [vmem:[%s134 + $0xc8] sm:$0xff] %v162
        %238 = vst [vmem:[%s134 + $0xd0] sm:$0xff] %v163
        %239 = vst [vmem:[%s134 + $0xd8] sm:$0xff] %v164
        %240 = vst [vmem:[%s134 + $0xe0] sm:$0xff] %v165
        %241 = vst [vmem:[%s134 + $0xe8] sm:$0xff] %v166
        %242 = vst [vmem:[%s134 + $0xf0] sm:$0xff] %v167
        %243 = vst [vmem:[%s134 + $0xf8] sm:$0xff] %v168
        %244 = vst [vmem:[%s134 + $0x100] sm:$0xff] %v169
        %245 = vst [vmem:[%s134 + $0x108] sm:$0xff] %v170
        %246 = vst [vmem:[%s134 + $0x110] sm:$0xff] %v171
        %247 = vst [vmem:[%s134 + $0x118] sm:$0xff] %v172
        %248 = vst [vmem:[%s134 + $0x120] sm:$0xff] %v173
        %249 = vst [vmem:[%s134 + $0x128] sm:$0xff] %v174
        %250 = vst [vmem:[%s134 + $0x130] sm:$0xff] %v175
        %251 = vst [vmem:[%s134 + $0x138] sm:$0xff] %v176
        %252 = vst [vmem:[%s134 + $0x140] sm:$0xff] %v177
        %253 = vst [vmem:[%s134 + $0x148] sm:$0xff] %v178
        %254 = vst [vmem:[%s134 + $0x150] sm:$0xff] %v179
        %255 = vst [vmem:[%s134 + $0x158] sm:$0xff] %v180
        %256 = vst [vmem:[%s134 + $0x160] sm:$0xff] %v181
        %257 = vst [vmem:[%s134 + $0x168] sm:$0xff] %v182
        %258 = vst [vmem:[%s134 + $0x170] sm:$0xff] %v183
        %259 = vst [vmem:[%s134 + $0x178] sm:$0xff] %v184
        %260 = vst [vmem:[%s134 + $0x180] sm:$0xff] %v185
        %261 = vst [vmem:[%s134 + $0x188] sm:$0xff] %v186
        %262 = vst [vmem:[%s134 + $0x190] sm:$0xff] %v187
        %263 = vst [vmem:[%s134 + $0x198] sm:$0xff] %v188
        %264 = vst [vmem:[%s134 + $0x1a0] sm:$0xff] %v189
        %265 = vst [vmem:[%s134 + $0x1a8] sm:$0xff] %v190
        %266 = vst [vmem:[%s134 + $0x1b0] sm:$0xff] %v191
        %267 = vst [vmem:[%s134 + $0x1b8] sm:$0xff] %v192
        %268 = vst [vmem:[%s134 + $0x1c0] sm:$0xff] %v193
        %269 = vst [vmem:[%s134 + $0x1c8] sm:$0xff] %v194
        %270 = vst [vmem:[%s134 + $0x1d0] sm:$0xff] %v195
        %271 = vst [vmem:[%s134 + $0x1d8] sm:$0xff] %v196
        %272 = vst [vmem:[%s134 + $0x1e0] sm:$0xff] %v197
        %273 = vst [vmem:[%s134 + $0x1e8] sm:$0xff] %v198
        %274 = vst [vmem:[%s134 + $0x1f0] sm:$0xff] %v199
        %275 = vst [vmem:[%s134 + $0x1f8] sm:$0xff] %v200
        %276 = vst [vmem:[%s134 + $0x200] sm:$0xff] %v201
        %277 = vst [vmem:[%s134 + $0x208] sm:$0xff] %v202
        %278 = vst [vmem:[%s134 + $0x210] sm:$0xff] %v203
        %279 = vst [vmem:[%s134 + $0x218] sm:$0xff] %v204
        %280 = vst [vmem:[%s134 + $0x220] sm:$0xff] %v205
        %281 = vst [vmem:[%s134 + $0x228] sm:$0xff] %v206
        %282 = vst [vmem:[%s134 + $0x230] sm:$0xff] %v207
        %283 = vst [vmem:[%s134 + $0x238] sm:$0xff] %v208
        %284 = vst [vmem:[%s134 + $0x240] sm:$0xff] %v209
        %285 = vst [vmem:[%s134 + $0x248] sm:$0xff] %v210
        %286 = vst [vmem:[%s134 + $0x250] sm:$0xff] %v211
        %s287 = sand.u32 %s52, 1
        %s288 = scalar_lea.sflag [#allocation4], %s287
        %s289 = sand.u32 %s52, 1
        %s290 = smul.addr %s289, 600
        %s291 = scalar_lea.vmem [#allocation5], %s290
        // Predicated region
        $region29: #{tpu_custom_call.1} parent=23 // pred_check
          %p292 = pneg %p62
        $region30: #{tpu_custom_call.1} parent=23 // pred_check_branch
          %294 = sbr.rel (%p292) target = $region32
        $region31: #{tpu_custom_call.1} parent=23 // pred_region
          %s295 = smul.u32 75, %s18
          %s297 = ssub.s32 9600, 9600
          %298 = vsyncadd %s288, %s297
          %s299 = smul.addr %s295, 128
          %s300 = scalar_lea.hbm %s1, %s299
          %s301 = sshll.u32 %s291, 4
          %s302 = int_to_ptr.vmem [resolvable:$true] %s301
          %307 = dma.vmem_to_hbm [thread:$0]  %s302, 9600, %s300, %s288, 128, 128, 8
        $region32: #{tpu_custom_call.1} parent=23 // pred_fallthru
          _
      $region24: #{tpu_custom_call.1} parent=5 // pred_fallthru
        _
      %p308 = scmp.le.s32.totalorder 2, %s13
      // Predicated region
      $region33: #{tpu_custom_call.1} parent=5 // pred_check
        %p309 = pneg %p308
      $region34: #{tpu_custom_call.1} parent=5 // pred_check_branch
        %311 = sbr.rel (%p309) target = $region36
      $region35: #{tpu_custom_call.1} parent=5 // pred_region
        %s312 = ssub.s32 %s13, 2
        // Predicated region
        $region37: #{tpu_custom_call.1} parent=35 // pred_check
          %p313 = pneg %p68
        $region38: #{tpu_custom_call.1} parent=35 // pred_check_branch
          %315 = sbr.rel (%p313) target = $region40
        $region39: #{tpu_custom_call.1} parent=35 // pred_region
          %s316 = sand.u32 %s53, 1
          %s317 = scalar_lea.sflag [#allocation4], %s316
          %s318 = sand.u32 %s53, 1
          %s319 = smul.addr %s318, 600
          %s320 = scalar_lea.vmem [#allocation5], %s319
          %321 = dma.done %s317, 9600
        $region40: #{tpu_custom_call.1} parent=35 // pred_fallthru
          _
      $region36: #{tpu_custom_call.1} parent=5 // pred_fallthru
        _
    $region6: #{tpu_custom_call.1} parent=1 // loop_footer
      %s17 = sadd.s32 1, %s13
    $region7: #{tpu_custom_call.1} parent=1 // loop_footer_branch
      %12 = sbr.rel target = $region3
    $region8: #{tpu_custom_call.1} parent=1 // loop_exit
      _
    %322 = vsyncpa [#allocation3], 1
    %s323 = scalar_lea.sflag [#allocation3], 1
    %324 = vsyncpa %s323, 1
    %325 = vsyncpa [#allocation4], 1
    %s326 = scalar_lea.sflag [#allocation4], 1
    %327 = vsyncpa %s326, 1

</llo_original>
